<compile_context>
chip_gen: v7x
topology: tpu7x:2x2x1
jax: 0.10.0
libtpu: 0.0.40
codegen_flags: <defaults>
</compile_context>

<pallas_src>
import jax
import jax.numpy as jnp
from jax.experimental import pallas as pl
from jax.experimental.pallas import tpu as pltpu

_LANES = 128


def _round_up(v, m):
    return ((v + m - 1) // m) * m


def _bn_reduce_kernel(x_ref, sum_ref, sq_ref):
    """Accumulate per-tile sum and sum-of-squares into resident (8,128) accs."""
    i = pl.program_id(0)

    @pl.when(i == 0)
    def _init():
        sum_ref[...] = jnp.zeros_like(sum_ref)
        sq_ref[...] = jnp.zeros_like(sq_ref)

    x = x_ref[...].astype(jnp.float32)          # (tile_rows, 128)
    chunks = x.shape[0] // 8                    # static
    xr = x.reshape(chunks, 8, _LANES)
    # Fold sublane-chunks with VALU adds; keep the single cross-lane reduce
    # for the (tiny) host-side finish instead of per-tile XLU reductions.
    sum_ref[...] += jnp.sum(xr, axis=0)
    sq_ref[...] += jnp.sum(xr * xr, axis=0)


def _bn_normalize_kernel(scale_ref, shift_ref, x_ref, o_ref):
    """out = x * scale + shift  (scale/shift are SMEM scalars)."""
    scale = scale_ref[0]
    shift = shift_ref[0]
    o_ref[...] = (x_ref[...].astype(jnp.float32) * scale + shift).astype(o_ref.dtype)


def bn1d_ref(xorig, gamma, beta, *, tile_rows=None):
    """xorig: any shape (e.g. NCHW), gamma/beta: scalar params."""
    orig_shape = xorig.shape
    total = int(xorig.size)
    rows = _round_up(total, _LANES) // _LANES

    # Tile choice: ~512 KiB f32 per tile, multiple of 8 sublanes, <= slab rows.
    if tile_rows is None:
        tile_rows = 1024
    tile_rows = max(8, _round_up(min(tile_rows, _round_up(rows, 8)), 8))
    rows_pad = _round_up(rows, tile_rows)
    num_tiles = rows_pad // tile_rows

    # Lane-dense 2D slab, zero-padded to a whole number of tiles.
    flat = xorig.reshape(-1)
    pad = rows_pad * _LANES - total
    if pad:
        flat = jnp.pad(flat, (0, pad))
    x2d = flat.reshape(rows_pad, _LANES)

    # ---------------- Phase 1: tiled sum / sum-of-squares reduction ---------
    part_sum, part_sq = pl.pallas_call(
        _bn_reduce_kernel,
        out_shape=(
            jax.ShapeDtypeStruct((8, _LANES), jnp.float32),
            jax.ShapeDtypeStruct((8, _LANES), jnp.float32),
        ),
        grid=(num_tiles,),
        in_specs=[pl.BlockSpec((tile_rows, _LANES), lambda i: (i, 0))],
        out_specs=(
            pl.BlockSpec((8, _LANES), lambda i: (0, 0)),   # resident accumulator
            pl.BlockSpec((8, _LANES), lambda i: (0, 0)),   # resident accumulator
        ),
        compiler_params=pltpu.CompilerParams(
            dimension_semantics=("arbitrary",),
            vmem_limit_bytes=32 * 1024 * 1024,
        ),
    )(x2d)

    # Tiny host-side (XLA) finish: scalars only.
    n = jnp.float32(total)
    total_sum = jnp.sum(part_sum)
    total_sq = jnp.sum(part_sq)
    mean = total_sum / n
    # Unbiased variance (torch.var default). f32 accumulation keeps the
    # E[x^2] - mean*E[x] formulation accurate for typical activation stats.
    var = (total_sq - total_sum * mean) / (n - 1.0)
    inv_std = jax.lax.rsqrt(var + jnp.float32(1e-10))
    g = jnp.asarray(gamma, jnp.float32)
    b = jnp.asarray(beta, jnp.float32)
    scale = (g * inv_std).reshape(1)
    shift = (b - mean * g * inv_std).reshape(1)

    # ---------------- Phase 2: tiled, parallel normalize ---------------------
    out2d = pl.pallas_call(
        _bn_normalize_kernel,
        out_shape=jax.ShapeDtypeStruct((rows_pad, _LANES), xorig.dtype),
        grid=(num_tiles,),
        in_specs=[
            pl.BlockSpec(memory_space=pltpu.MemorySpace.SMEM),  # scale
            pl.BlockSpec(memory_space=pltpu.MemorySpace.SMEM),  # shift
            pl.BlockSpec((tile_rows, _LANES), lambda i: (i, 0)),
        ],
        out_specs=pl.BlockSpec((tile_rows, _LANES), lambda i: (i, 0)),
        compiler_params=pltpu.CompilerParams(
            dimension_semantics=("parallel",),
            vmem_limit_bytes=32 * 1024 * 1024,
        ),
    )(scale, shift, x2d)

    return out2d.reshape(-1)[:total].reshape(orig_shape)


def bn1d_ref_jax(xorig, gamma, beta):
    """Pure-JAX reference for checking."""
    x = xorig.reshape(-1).astype(jnp.float32)
    mean = jnp.mean(x)
    var = jnp.sum((x - mean) ** 2) / (x.size - 1)
    return (gamma * (xorig - mean) / jnp.sqrt(var + 1e-10) + beta).astype(xorig.dtype)


if __name__ == "__main__":
    key = jax.random.PRNGKey(0)
    # NCHW input, as PyTorch would supply (batch=2, channels=4, 16x16 spatial)
    x = jax.random.normal(key, (2, 4, 16, 16), dtype=jnp.float32)

    # Deterministic parameter init matching BN1dRef.__init__
    gamma = jnp.float32(1.0)
    beta = jnp.float32(0.0)

    ref = bn1d_ref_jax(x, gamma, beta)

    # Default path (single tile at this small size, still two pipelined passes).
    out = bn1d_ref(x, gamma, beta)
    jax.block_until_ready(out)
    assert out.shape == x.shape
    assert jnp.allclose(out, ref, atol=2e-5, rtol=2e-5), "mismatch vs JAX reference"

    # Force a small tile to exercise the multi-tile grid / resident accumulator
    # path (grid=(2,)) on the same small input.
    out_tiled = bn1d_ref(x, gamma, beta, tile_rows=8)
    jax.block_until_ready(out_tiled)
    assert jnp.allclose(out_tiled, ref, atol=2e-5, rtol=2e-5), "tiled path mismatch"

    print("KERNEL_OK")
</pallas_src>

<mosaic_0001>
module attributes {stable_mosaic.version = 11 : i64} {
  func.func @_bn_reduce_kernel(%arg0: i32, %arg1: memref<16x128xf32, #tpu.memory_space<vmem>>, %arg2: memref<8x128xf32, #tpu.memory_space<vmem>>, %arg3: memref<8x128xf32, #tpu.memory_space<vmem>>) attributes {dimension_semantics = [#tpu.dimension_semantics<arbitrary>], iteration_bounds = array<i64: 1>, scalar_prefetch = 0 : i64, scratch_operands = 0 : i64, tpu.core_type = #tpu.core_type<tc>, window_params = [{transform_indices = @transform_0, window_bounds = array<i64: 16, 128>}, {pipeline_mode = #tpu.pipeline_mode<synchronous>, transform_indices = @transform_1, window_bounds = array<i64: 8, 128>}, {pipeline_mode = #tpu.pipeline_mode<synchronous>, transform_indices = @transform_2, window_bounds = array<i64: 8, 128>}]} {
    %c0_i32 = arith.constant 0 : i32
    %0 = arith.cmpi eq, %arg0, %c0_i32 : i32
    %1 = arith.extui %0 : i1 to i32
    %c0_i32_0 = arith.constant 0 : i32
    %2 = arith.cmpi ne, %1, %c0_i32_0 : i32
    scf.if %2 {
      %cst_11 = arith.constant 0.000000e+00 : f32
      %14 = vector.broadcast %cst_11 : f32 to vector<8x128xf32>
      %c0_12 = arith.constant 0 : index
      %c0_13 = arith.constant 0 : index
      %15 = vector.load %arg2[%c0_12, %c0_13] : memref<8x128xf32, #tpu.memory_space<vmem>>, vector<8x128xf32>
      tpu.vector_store %arg2[%c0_12, %c0_13], %14 {strides = array<i32>} : memref<8x128xf32, #tpu.memory_space<vmem>>, vector<8x128xf32>,
      %cst_14 = arith.constant 0.000000e+00 : f32
      %16 = vector.broadcast %cst_14 : f32 to vector<8x128xf32>
      %c0_15 = arith.constant 0 : index
      %c0_16 = arith.constant 0 : index
      %17 = vector.load %arg3[%c0_15, %c0_16] : memref<8x128xf32, #tpu.memory_space<vmem>>, vector<8x128xf32>
      tpu.vector_store %arg3[%c0_15, %c0_16], %16 {strides = array<i32>} : memref<8x128xf32, #tpu.memory_space<vmem>>, vector<8x128xf32>,
    } else {
    }
    %c0 = arith.constant 0 : index
    %c0_1 = arith.constant 0 : index
    %3 = vector.load %arg1[%c0, %c0_1] : memref<16x128xf32, #tpu.memory_space<vmem>>, vector<16x128xf32>
    %4 = vector.shape_cast %3 : vector<16x128xf32> to vector<2x8x128xf32>
    %c0_2 = arith.constant 0 : index
    %c0_3 = arith.constant 0 : index
    %5 = vector.load %arg2[%c0_2, %c0_3] : memref<8x128xf32, #tpu.memory_space<vmem>>, vector<8x128xf32>
    %cst = arith.constant dense<0.000000e+00> : vector<8x128xf32>
    %6 = vector.multi_reduction <add>, %4, %cst [0] : vector<2x8x128xf32> to vector<8x128xf32>
    %7 = arith.addf %5, %6 : vector<8x128xf32>
    %c0_4 = arith.constant 0 : index
    %c0_5 = arith.constant 0 : index
    %8 = vector.load %arg2[%c0_4, %c0_5] : memref<8x128xf32, #tpu.memory_space<vmem>>, vector<8x128xf32>
    tpu.vector_store %arg2[%c0_4, %c0_5], %7 {strides = array<i32>} : memref<8x128xf32, #tpu.memory_space<vmem>>, vector<8x128xf32>,
    %c0_6 = arith.constant 0 : index
    %c0_7 = arith.constant 0 : index
    %9 = vector.load %arg3[%c0_6, %c0_7] : memref<8x128xf32, #tpu.memory_space<vmem>>, vector<8x128xf32>
    %10 = arith.mulf %4, %4 : vector<2x8x128xf32>
    %cst_8 = arith.constant dense<0.000000e+00> : vector<8x128xf32>
    %11 = vector.multi_reduction <add>, %10, %cst_8 [0] : vector<2x8x128xf32> to vector<8x128xf32>
    %12 = arith.addf %9, %11 : vector<8x128xf32>
    %c0_9 = arith.constant 0 : index
    %c0_10 = arith.constant 0 : index
    %13 = vector.load %arg3[%c0_9, %c0_10] : memref<8x128xf32, #tpu.memory_space<vmem>>, vector<8x128xf32>
    tpu.vector_store %arg3[%c0_9, %c0_10], %12 {strides = array<i32>} : memref<8x128xf32, #tpu.memory_space<vmem>>, vector<8x128xf32>,
    return
  }
  func.func @transform_0(%arg0: i32) -> (i32, i32) {
    %c0_i32 = arith.constant 0 : i32
    %c0_i32_0 = arith.constant 0 : i32
    return %arg0, %c0_i32 : i32, i32
  }
  func.func @transform_1(%arg0: i32) -> (i32, i32) {
    %c0_i32 = arith.constant 0 : i32
    %c0_i32_0 = arith.constant 0 : i32
    %c0_i32_1 = arith.constant 0 : i32
    return %c0_i32, %c0_i32_0 : i32, i32
  }
  func.func @transform_2(%arg0: i32) -> (i32, i32) {
    %c0_i32 = arith.constant 0 : i32
    %c0_i32_0 = arith.constant 0 : i32
    %c0_i32_1 = arith.constant 0 : i32
    return %c0_i32, %c0_i32_0 : i32, i32
  }
}

</mosaic_0001>

<llo_original>
// kernel: tpu_custom_call.1
$region0: #{tpu_custom_call.1}
  #allocation0 [shape = 'u32[]', space=smem, size = 0x4, offset = 0x4, fixed_abs, tag = 'smem constant byte address 0x4 - core index']
  #allocation1 [shape = 'u32[144,128]{1,0:T(1,128)}', space=vmem, size = 0x12000, scoped, tag = 'internal scratch']
  %s0 = inlined_call_operand.hbm [shape: f32[16,128], index: 0, kind: input, shape index: {}]
  %s1 = inlined_call_operand.hbm [shape: f32[8,128], index: 1, kind: output, shape index: {0}]
  %s2 = inlined_call_operand.hbm [shape: f32[8,128], index: 2, kind: output, shape index: {1}]
  %3 = xla_tuple %s1, %s2
  %s4 = sld [smem:[#allocation0]]
  $region30: #{tpu_custom_call.1} parent=0
    _
  %s6 = ssub.s32 1, %s4
  %s7 = scalar_select 0, %s6, %s4
  $region1: #{tpu_custom_call.1} parent=0
    #allocation2 [shape = 'u8[8192]{0}', space=vmem, size = 0x2000, scoped, tag = 'input window, operand 0, single buffered']
    #allocation3 [shape = 's32[1]{0}', space=sflag, size = 0x4, scoped, tag = 'scoped memory for tpu_custom_call.1']
    #allocation4 [shape = 's32[1]{0}', space=sflag, size = 0x4, scoped, tag = 'scoped memory for tpu_custom_call.1']
    #allocation5 [shape = 'u8[4096]{0}', space=vmem, size = 0x1000, scoped, tag = 'output window, operand 0, single buffered']
    #allocation6 [shape = 'u8[4096]{0}', space=vmem, size = 0x1000, scoped, tag = 'output window, operand 1, single buffered']
    #allocation7 [shape = 's32[1]{0}', space=sflag, size = 0x4, scoped, tag = 'scoped memory for tpu_custom_call.1']
    %8 = vsyncpa [#allocation3], 0
    %9 = vsyncpa [#allocation4], 0
    %10 = vsyncpa [#allocation7], 0
    // Predicated region
    $region2: #{tpu_custom_call.1} parent=1 // pred_check
      _
    $region3: #{tpu_custom_call.1} parent=1 // pred_check_branch
      %12 = sbr.rel (0) target = $region5
    $region4: #{tpu_custom_call.1} parent=1 // pred_region
      %s14 = ssub.s32 256, 256
      %15 = vsyncadd [#allocation3], %s14
      %s16 = sshll.u32 [#allocation2], 4
      %s17 = int_to_ptr.vmem [resolvable:$true] %s16
      %22 = dma.hbm_to_vmem [thread:$0]  %s0, 256, %s17, [#allocation3], 128, 128, 8
    $region5: #{tpu_custom_call.1} parent=1 // pred_fallthru
      _
    // Predicated region
    $region6: #{tpu_custom_call.1} parent=1 // pred_check
      _
    $region7: #{tpu_custom_call.1} parent=1 // pred_check_branch
      %24 = sbr.rel (0) target = $region9
    $region8: #{tpu_custom_call.1} parent=1 // pred_region
      %25 = dma.done [#allocation3], 256
    $region9: #{tpu_custom_call.1} parent=1 // pred_fallthru
      _
    %p26 = scmp.eq.s32.totalorder 0, 0
    // Predicated region
    $region10: #{tpu_custom_call.1} parent=1 // pred_check
      %p27 = pneg %p26
    $region11: #{tpu_custom_call.1} parent=1 // pred_check_branch
      %29 = sbr.rel (%p27) target = $region13
    $region12: #{tpu_custom_call.1} parent=1 // pred_region
      %30 = vst [vmem:[#allocation5] sm:$0xff] 0.0
      %31 = vst [vmem:[#allocation6] sm:$0xff] 0.0
    $region13: #{tpu_custom_call.1} parent=1 // pred_fallthru
      _
    %v32 = vld [vmem:[#allocation2] sm:$0xff]
    %v33 = vld [vmem:[#allocation2 + $0x8] sm:$0xff]
    %v34 = vld [vmem:[#allocation5] sm:$0xff]
    %v35 = vadd.f32 %v32, %v33
    %v36 = vadd.f32 %v34, %v35
    %37 = vst [vmem:[#allocation5] sm:$0xff] %v36
    %v38 = vld [vmem:[#allocation6] sm:$0xff]
    %v39 = vmul.f32 %v32, %v32
    %v40 = vmul.f32 %v33, %v33
    %v41 = vadd.f32 %v39, %v40
    %v42 = vadd.f32 %v38, %v41
    %43 = vst [vmem:[#allocation6] sm:$0xff] %v42
    // Predicated region
    $region14: #{tpu_custom_call.1} parent=1 // pred_check
      _
    $region15: #{tpu_custom_call.1} parent=1 // pred_check_branch
      %45 = sbr.rel (0) target = $region17
    $region16: #{tpu_custom_call.1} parent=1 // pred_region
      %s47 = ssub.s32 128, 128
      %48 = vsyncadd [#allocation4], %s47
      %s50 = sshll.u32 [#allocation5], 4
      %s51 = int_to_ptr.vmem [resolvable:$true] %s50
      %53 = dma.vmem_to_hbm [thread:$0]  %s51, 128, %s1, [#allocation4]
    $region17: #{tpu_custom_call.1} parent=1 // pred_fallthru
      _
    // Predicated region
    $region18: #{tpu_custom_call.1} parent=1 // pred_check
      _
    $region19: #{tpu_custom_call.1} parent=1 // pred_check_branch
      %55 = sbr.rel (0) target = $region21
    $region20: #{tpu_custom_call.1} parent=1 // pred_region
      %s57 = ssub.s32 128, 128
      %58 = vsyncadd [#allocation7], %s57
      %s60 = sshll.u32 [#allocation6], 4
      %s61 = int_to_ptr.vmem [resolvable:$true] %s60
      %63 = dma.vmem_to_hbm [thread:$0]  %s61, 128, %s2, [#allocation7]
    $region21: #{tpu_custom_call.1} parent=1 // pred_fallthru
      _
    // Predicated region
    $region22: #{tpu_custom_call.1} parent=1 // pred_check
      _
    $region23: #{tpu_custom_call.1} parent=1 // pred_check_branch
      %65 = sbr.rel (0) target = $region25
    $region24: #{tpu_custom_call.1} parent=1 // pred_region
      %66 = dma.done [#allocation4], 128
    $region25: #{tpu_custom_call.1} parent=1 // pred_fallthru
      _
    // Predicated region
    $region26: #{tpu_custom_call.1} parent=1 // pred_check
      _
    $region27: #{tpu_custom_call.1} parent=1 // pred_check_branch
      %68 = sbr.rel (0) target = $region29
    $region28: #{tpu_custom_call.1} parent=1 // pred_region
      %69 = dma.done [#allocation7], 128
    $region29: #{tpu_custom_call.1} parent=1 // pred_fallthru
      _
    %70 = vsyncpa [#allocation3], 1
    %71 = vsyncpa [#allocation4], 1
    %72 = vsyncpa [#allocation7], 1

</llo_original>
